<compile_context>
chip_gen: v7x
topology: tpu7x:2x2x1
jax: 0.10.0
libtpu: 0.0.40
codegen_flags: <defaults>
</compile_context>

<pallas_src>
import jax
import jax.numpy as jnp
from jax import lax
from jax.experimental import pallas as pl
from jax.experimental.pallas import tpu as pltpu

M_MARGIN = 0.25
GAMMA = 256.0
LAMBDA = 0.01
_NEG_FILL = -1e30
# bf16 Gram matmul would double MXU throughput, but GAMMA=256 amplifies the
# ~1e-3 sim error past the rtol=1e-4 check, so keep f32 operands by default.
USE_BF16_MATMUL = False


def _circle_loss_kernel(q_ref, kT_ref, labq_ref, labk_ref, out_ref):
    TR = q_ref.shape[0]
    Np = kT_ref.shape[1]

    # --- L2-normalize the query rows (rsqrt -> EUP; matches F.normalize eps=1e-12)
    q = q_ref[...].astype(jnp.float32)                          # (TR, Dp)
    sumsq = jnp.sum(q * q, axis=1, keepdims=True)
    fn_q = q * lax.rsqrt(jnp.maximum(sumsq, 1e-24))

    # --- Gram slab: (TR, Dp) x (Dp, Np) -> (TR, Np), MXU, no transpose needed
    kT = kT_ref[...]
    if USE_BF16_MATMUL:
        sim = jnp.dot(fn_q.astype(jnp.bfloat16), kT.astype(jnp.bfloat16),
                      preferred_element_type=jnp.float32)
    else:
        sim = jnp.dot(fn_q, kT, preferred_element_type=jnp.float32)

    labq = labq_ref[...]                                        # (TR, 1) int32
    labk = labk_ref[...]                                        # (1, Np) int32
    pos = labq == labk                                          # (TR, Np) bool (incl. diag)
    valid_k = labk >= 0                                         # (1, Np) real key columns
    valid_q = (labq >= 0).astype(jnp.float32)                   # (TR, 1) real query rows

    row0 = pl.program_id(0) * TR
    row_g = lax.broadcasted_iota(jnp.int32, (TR, Np), 0) + row0
    col_g = lax.broadcasted_iota(jnp.int32, (TR, Np), 1)
    diag = row_g == col_g

    # sim_matrix = sim - eye * 2
    sim = jnp.where(diag, sim - 2.0, sim)

    # Boolean selects, same semantics as the reference's float-mask multiplies.
    ps = jnp.where(pos, sim, 0.0)                               # sim * pos_mask
    ns = jnp.where(jnp.logical_and(~pos, ~diag), sim, 0.0)      # sim * neg_mask

    logit_p = -GAMMA * jnp.maximum(-ps + (1.0 + M_MARGIN), 0.0) * (ps - (1.0 - M_MARGIN))
    logit_n = GAMMA * jnp.maximum(ns + M_MARGIN, 0.0) * (ns - M_MARGIN)
    # Padded key columns must contribute exactly zero to both log-sum-exps.
    logit_p = jnp.where(valid_k, logit_p, _NEG_FILL)
    logit_n = jnp.where(valid_k, logit_n, _NEG_FILL)

    def lse(x):  # log-sum-exp over dim=1, keepdim
        mx = jnp.max(x, axis=1, keepdims=True)
        return mx + jnp.log(jnp.sum(jnp.exp(x - mx), axis=1, keepdims=True))

    z = lse(logit_n) + lse(logit_p)                             # (TR, 1)
    # softplus (numerically stable, matches nn.Softplus(beta=1) incl. linear tail)
    sp = jnp.maximum(z, 0.0) + jnp.log1p(jnp.exp(-jnp.abs(z)))

    sp_sum = jnp.sum(sp * valid_q)
    has_pos = (jnp.sum(jnp.where(jnp.logical_and(pos, valid_k), 1.0, 0.0),
                       axis=1, keepdims=True) > 0).astype(jnp.float32)
    nv = jnp.sum(has_pos * valid_q)

    # Lane-dense per-tile partials: lane 0 = sum(softplus), lane 1 = num_valid.
    lanes = lax.broadcasted_iota(jnp.int32, (1, 8, 128), 2)
    out_ref[...] = jnp.where(lanes == 0, sp_sum,
                             jnp.where(lanes == 1, nv, 0.0))


def _round_up(x, m):
    return (x + m - 1) // m * m


def video_reid_circle_loss(feature_dict):
    # Host-side glue: concatenate per-identity stacks, build contiguous labels.
    feats, labels = [], []
    for new_id, (_, f) in enumerate(feature_dict.items()):
        f = jnp.asarray(f, dtype=jnp.float32)
        feats.append(f)
        labels.extend([new_id] * f.shape[0])          # remap ids -> 0..K-1 (>=0)
    features = jnp.concatenate(feats, axis=0)         # (N, D)
    labels = jnp.asarray(labels, dtype=jnp.int32)
    N, D = features.shape

    # --- padding / tiling ---------------------------------------------------
    D_pad = _round_up(D, 128)
    TR = 128
    n_rough = _round_up(N, 8)
    # keep ~8 live (TR, N_pad) f32 temporaries under ~24 MiB (v7x 64 MiB safe)
    while TR > 8 and 8 * TR * _round_up(n_rough, TR) * 4 > (24 << 20):
        TR //= 2
    N_pad = n_rough if n_rough <= TR else _round_up(N, TR)
    TR = min(TR, N_pad)
    num_tiles = N_pad // TR

    feat_p = jnp.zeros((N_pad, D_pad), jnp.float32).at[:N, :D].set(features)
    lab_p = jnp.full((N_pad,), -1, jnp.int32).at[:N].set(labels)   # -1 = padded

    # Pre-normalized, pre-transposed key operand (D_pad, N_pad): resident in
    # VMEM across all row tiles; the MXU gets [M,K]x[K,N] with no transpose.
    norm = jnp.sqrt(jnp.sum(feat_p * feat_p, axis=1, keepdims=True))
    kT = (feat_p / jnp.maximum(norm, 1e-12)).T                      # (D_pad, N_pad)

    lab_col = lab_p.reshape(N_pad, 1)
    lab_row = lab_p.reshape(1, N_pad)

    # VMEM budget: double-buffered inputs + ~8 live (TR, N_pad) f32 temporaries.
    est = 4 * (2 * TR * D_pad + 2 * D_pad * N_pad + 2 * TR + 2 * N_pad
               + 2 * 8 * 128) + 4 * 8 * TR * N_pad
    vmem_limit = int(min(max(est * 5 // 4, 8 << 20), 48 << 20))

    out = pl.pallas_call(
        _circle_loss_kernel,
        out_shape=jax.ShapeDtypeStruct((num_tiles, 8, 128), jnp.float32),
        grid_spec=pltpu.PrefetchScalarGridSpec(
            num_scalar_prefetch=0,
            grid=(num_tiles,),
            in_specs=[
                pl.BlockSpec((TR, D_pad), lambda i: (i, 0)),     # query row tile
                pl.BlockSpec((D_pad, N_pad), lambda i: (0, 0)),  # resident keys^T
                pl.BlockSpec((TR, 1), lambda i: (i, 0)),         # query labels
                pl.BlockSpec((1, N_pad), lambda i: (0, 0)),      # key labels
            ],
            out_specs=pl.BlockSpec((1, 8, 128), lambda i: (i, 0, 0)),
        ),
        compiler_params=pltpu.CompilerParams(
            dimension_semantics=("parallel",),
            vmem_limit_bytes=vmem_limit,
        ),
    )(feat_p, kT, lab_col, lab_row)

    sum_sp = jnp.sum(out[:, 0, 0])
    num_valid = jnp.sum(out[:, 0, 1])
    return LAMBDA * jnp.maximum(sum_sp / num_valid, 0.0)


def _reference_loss(feature_dict):
    # Pure-JAX reference mirroring the PyTorch forward exactly (unpadded).
    feats, labels = [], []
    for idx, f in feature_dict.items():
        feats.append(jnp.asarray(f, dtype=jnp.float32))
        labels.extend([int(idx)] * f.shape[0])
    features = jnp.concatenate(feats, axis=0)
    labels = jnp.asarray(labels, dtype=jnp.int32)
    N = features.shape[0]
    norm = jnp.sqrt(jnp.sum(features * features, axis=1, keepdims=True))
    fn = features / jnp.maximum(norm, 1e-12)
    sim = fn @ fn.T
    label_matrix = labels[None, :] == labels[:, None]
    eye = jnp.eye(N, dtype=jnp.float32)
    sim = sim - eye * 2.0
    pos_mask = label_matrix.astype(jnp.float32)
    neg_mask = (1.0 - pos_mask) * (1.0 - eye)
    pos_sim = sim * pos_mask
    neg_sim = sim * neg_mask
    alpha_p = jnp.maximum(-pos_sim + 1.0 + M_MARGIN, 0.0)
    alpha_n = jnp.maximum(neg_sim + M_MARGIN, 0.0)
    logit_p = -GAMMA * alpha_p * (pos_sim - (1.0 - M_MARGIN))
    logit_n = GAMMA * alpha_n * (neg_sim - M_MARGIN)

    def lse(x):
        mx = jnp.max(x, axis=1, keepdims=True)
        return mx + jnp.log(jnp.sum(jnp.exp(x - mx), axis=1, keepdims=True))

    z = lse(logit_n) + lse(logit_p)
    sp = jnp.maximum(z, 0.0) + jnp.log1p(jnp.exp(-jnp.abs(z)))
    num_valid = jnp.sum((jnp.sum(pos_mask, axis=1) > 0).astype(jnp.float32))
    return LAMBDA * jnp.maximum(jnp.sum(sp) / num_valid, 0.0)


if __name__ == "__main__":
    key = jax.random.PRNGKey(0)
    # 4 identities x 2 samples each, hidden dim 32  => N=8, D=32
    num_ids, samples_per_id, hidden = 4, 2, 32
    feature_dict = {}
    for i in range(num_ids):
        key, sub = jax.random.split(key)
        feature_dict[i] = jax.random.normal(sub, (samples_per_id, hidden),
                                            dtype=jnp.float32)

    loss = video_reid_circle_loss(feature_dict)
    jax.block_until_ready(loss)

    ref = _reference_loss(feature_dict)
    assert jnp.allclose(loss, ref, rtol=1e-4, atol=1e-5), (loss, ref)
    print("KERNEL_OK")
</pallas_src>

<mosaic_0001>
module attributes {stable_mosaic.version = 11 : i64} {
  func.func @_circle_loss_kernel(%arg0: i32, %arg1: memref<8x128xf32, #tpu.memory_space<vmem>>, %arg2: memref<128x8xf32, #tpu.memory_space<vmem>>, %arg3: memref<8x1xi32, #tpu.memory_space<vmem>>, %arg4: memref<1x8xi32, #tpu.memory_space<vmem>>, %arg5: memref<1x8x128xf32, #tpu.memory_space<vmem>>) attributes {dimension_semantics = [#tpu.dimension_semantics<parallel>], iteration_bounds = array<i64: 1>, scalar_prefetch = 0 : i64, scratch_operands = 0 : i64, tpu.core_type = #tpu.core_type<tc>, window_params = [{transform_indices = @transform_0, window_bounds = array<i64: 8, 128>}, {pipeline_mode = #tpu.pipeline_mode<synchronous>, transform_indices = @transform_1, window_bounds = array<i64: 128, 8>}, {transform_indices = @transform_2, window_bounds = array<i64: 8, 1>}, {pipeline_mode = #tpu.pipeline_mode<synchronous>, transform_indices = @transform_3, window_bounds = array<i64: 1, 8>}, {transform_indices = @transform_4, window_bounds = array<i64: 1, 8, 128>}]} {
    %c0 = arith.constant 0 : index
    %c0_0 = arith.constant 0 : index
    %0 = vector.load %arg1[%c0, %c0_0] : memref<8x128xf32, #tpu.memory_space<vmem>>, vector<8x128xf32>
    %1 = arith.mulf %0, %0 : vector<8x128xf32>
    %cst = arith.constant dense<0.000000e+00> : vector<8xf32>
    %2 = vector.multi_reduction <add>, %1, %cst [1] : vector<8x128xf32> to vector<8xf32>
    %3 = vector.shape_cast %2 : vector<8xf32> to vector<8x1xf32>
    %cst_1 = arith.constant 1.000000e-24 : f32
    %4 = vector.broadcast %cst_1 : f32 to vector<8x1xf32>
    %5 = arith.maximumf %3, %4 : vector<8x1xf32>
    %6 = math.rsqrt %5 : vector<8x1xf32>
    %7 = vector.broadcast %6 : vector<8x1xf32> to vector<8x128xf32>
    %8 = arith.mulf %0, %7 : vector<8x128xf32>
    %c0_2 = arith.constant 0 : index
    %c0_3 = arith.constant 0 : index
    %9 = vector.load %arg2[%c0_2, %c0_3] : memref<128x8xf32, #tpu.memory_space<vmem>>, vector<128x8xf32>
    %cst_4 = arith.constant dense<0.000000e+00> : vector<8x8xf32>
    %10 = tpu.matmul %8, %9, %cst_4 {dimension_numbers = #tpu.dot_dimension_numbers<[1], [0], [0], [1], [0, 0, 1, 1], [], []>} : vector<8x128xf32>, vector<128x8xf32>, vector<8x8xf32> -> vector<8x8xf32>
    %c0_5 = arith.constant 0 : index
    %c0_6 = arith.constant 0 : index
    %11 = vector.load %arg3[%c0_5, %c0_6] : memref<8x1xi32, #tpu.memory_space<vmem>>, vector<8x1xi32>
    %c0_7 = arith.constant 0 : index
    %c0_8 = arith.constant 0 : index
    %12 = vector.load %arg4[%c0_7, %c0_8] : memref<1x8xi32, #tpu.memory_space<vmem>>, vector<1x8xi32>
    %13 = vector.broadcast %11 : vector<8x1xi32> to vector<8x8xi32>
    %14 = vector.broadcast %12 : vector<1x8xi32> to vector<8x8xi32>
    %15 = arith.cmpi eq, %13, %14 : vector<8x8xi32>
    %c0_i32 = arith.constant 0 : i32
    %16 = vector.broadcast %c0_i32 : i32 to vector<1x8xi32>
    %17 = arith.cmpi sge, %12, %16 : vector<1x8xi32>
    %c0_i32_9 = arith.constant 0 : i32
    %18 = vector.broadcast %c0_i32_9 : i32 to vector<8x1xi32>
    %19 = arith.cmpi sge, %11, %18 : vector<8x1xi32>
    %20 = arith.extui %19 : vector<8x1xi1> to vector<8x1xi32>
    %21 = arith.sitofp %20 : vector<8x1xi32> to vector<8x1xf32>
    %c8_i32 = arith.constant 8 : i32
    %22 = arith.muli %arg0, %c8_i32 : i32
    %23 = tpu.iota {dimensions = array<i32: 0>} : vector<8x8xi32>
    %24 = vector.broadcast %22 : i32 to vector<8x8xi32>
    %25 = arith.addi %23, %24 : vector<8x8xi32>
    %26 = tpu.iota {dimensions = array<i32: 1>} : vector<8x8xi32>
    %27 = arith.cmpi eq, %25, %26 : vector<8x8xi32>
    %cst_10 = arith.constant 2.000000e+00 : f32
    %28 = vector.broadcast %cst_10 : f32 to vector<8x8xf32>
    %29 = arith.subf %10, %28 : vector<8x8xf32>
    %30 = arith.select %27, %29, %10 : vector<8x8xi1>, vector<8x8xf32>
    %cst_11 = arith.constant 0.000000e+00 : f32
    %31 = vector.broadcast %cst_11 : f32 to vector<8x8xf32>
    %32 = arith.select %15, %30, %31 : vector<8x8xi1>, vector<8x8xf32>
    %cst_12 = arith.constant dense<true> : vector<8x8xi1>
    %33 = arith.xori %15, %cst_12 : vector<8x8xi1>
    %cst_13 = arith.constant dense<true> : vector<8x8xi1>
    %34 = arith.xori %27, %cst_13 : vector<8x8xi1>
    %35 = arith.andi %33, %34 : vector<8x8xi1>
    %cst_14 = arith.constant 0.000000e+00 : f32
    %36 = vector.broadcast %cst_14 : f32 to vector<8x8xf32>
    %37 = arith.select %35, %30, %36 : vector<8x8xi1>, vector<8x8xf32>
    %cst_15 = arith.constant 0.000000e+00 : f32
    %38 = vector.broadcast %cst_15 : f32 to vector<8x8xf32>
    %39 = arith.subf %38, %32 : vector<8x8xf32>
    %cst_16 = arith.constant 1.250000e+00 : f32
    %40 = vector.broadcast %cst_16 : f32 to vector<8x8xf32>
    %41 = arith.addf %39, %40 : vector<8x8xf32>
    %cst_17 = arith.constant 0.000000e+00 : f32
    %42 = vector.broadcast %cst_17 : f32 to vector<8x8xf32>
    %43 = arith.maximumf %41, %42 : vector<8x8xf32>
    %cst_18 = arith.constant -2.560000e+02 : f32
    %44 = vector.broadcast %cst_18 : f32 to vector<8x8xf32>
    %45 = arith.mulf %44, %43 : vector<8x8xf32>
    %cst_19 = arith.constant 7.500000e-01 : f32
    %46 = vector.broadcast %cst_19 : f32 to vector<8x8xf32>
    %47 = arith.subf %32, %46 : vector<8x8xf32>
    %48 = arith.mulf %45, %47 : vector<8x8xf32>
    %cst_20 = arith.constant 2.500000e-01 : f32
    %49 = vector.broadcast %cst_20 : f32 to vector<8x8xf32>
    %50 = arith.addf %37, %49 : vector<8x8xf32>
    %cst_21 = arith.constant 0.000000e+00 : f32
    %51 = vector.broadcast %cst_21 : f32 to vector<8x8xf32>
    %52 = arith.maximumf %50, %51 : vector<8x8xf32>
    %cst_22 = arith.constant 2.560000e+02 : f32
    %53 = vector.broadcast %cst_22 : f32 to vector<8x8xf32>
    %54 = arith.mulf %53, %52 : vector<8x8xf32>
    %cst_23 = arith.constant 2.500000e-01 : f32
    %55 = vector.broadcast %cst_23 : f32 to vector<8x8xf32>
    %56 = arith.subf %37, %55 : vector<8x8xf32>
    %57 = arith.mulf %54, %56 : vector<8x8xf32>
    %cst_24 = arith.constant -1.000000e+30 : f32
    %58 = vector.shape_cast %17 : vector<1x8xi1> to vector<1x8xi1>
    %59 = vector.broadcast %58 : vector<1x8xi1> to vector<8x8xi1>
    %60 = vector.broadcast %cst_24 : f32 to vector<8x8xf32>
    %61 = arith.select %59, %48, %60 : vector<8x8xi1>, vector<8x8xf32>
    %cst_25 = arith.constant -1.000000e+30 : f32
    %62 = vector.shape_cast %17 : vector<1x8xi1> to vector<1x8xi1>
    %63 = vector.broadcast %62 : vector<1x8xi1> to vector<8x8xi1>
    %64 = vector.broadcast %cst_25 : f32 to vector<8x8xf32>
    %65 = arith.select %63, %57, %64 : vector<8x8xi1>, vector<8x8xf32>
    %cst_26 = arith.constant dense<0xFF800000> : vector<8xf32>
    %66 = vector.multi_reduction <maximumf>, %65, %cst_26 [1] : vector<8x8xf32> to vector<8xf32>
    %67 = vector.shape_cast %66 : vector<8xf32> to vector<8x1xf32>
    %68 = vector.broadcast %67 : vector<8x1xf32> to vector<8x8xf32>
    %69 = arith.subf %65, %68 : vector<8x8xf32>
    %70 = math.exp %69 : vector<8x8xf32>
    %cst_27 = arith.constant dense<0.000000e+00> : vector<8xf32>
    %71 = vector.multi_reduction <add>, %70, %cst_27 [1] : vector<8x8xf32> to vector<8xf32>
    %72 = vector.shape_cast %71 : vector<8xf32> to vector<8x1xf32>
    %73 = math.log %72 : vector<8x1xf32>
    %74 = arith.addf %67, %73 : vector<8x1xf32>
    %cst_28 = arith.constant dense<0xFF800000> : vector<8xf32>
    %75 = vector.multi_reduction <maximumf>, %61, %cst_28 [1] : vector<8x8xf32> to vector<8xf32>
    %76 = vector.shape_cast %75 : vector<8xf32> to vector<8x1xf32>
    %77 = vector.broadcast %76 : vector<8x1xf32> to vector<8x8xf32>
    %78 = arith.subf %61, %77 : vector<8x8xf32>
    %79 = math.exp %78 : vector<8x8xf32>
    %cst_29 = arith.constant dense<0.000000e+00> : vector<8xf32>
    %80 = vector.multi_reduction <add>, %79, %cst_29 [1] : vector<8x8xf32> to vector<8xf32>
    %81 = vector.shape_cast %80 : vector<8xf32> to vector<8x1xf32>
    %82 = math.log %81 : vector<8x1xf32>
    %83 = arith.addf %76, %82 : vector<8x1xf32>
    %84 = arith.addf %74, %83 : vector<8x1xf32>
    %cst_30 = arith.constant 0.000000e+00 : f32
    %85 = vector.broadcast %cst_30 : f32 to vector<8x1xf32>
    %86 = arith.maximumf %84, %85 : vector<8x1xf32>
    %87 = math.absf %84 : vector<8x1xf32>
    %cst_31 = arith.constant 0.000000e+00 : f32
    %88 = vector.broadcast %cst_31 : f32 to vector<8x1xf32>
    %89 = arith.subf %88, %87 : vector<8x1xf32>
    %90 = math.exp %89 : vector<8x1xf32>
    %91 = math.log1p %90 : vector<8x1xf32>
    %92 = arith.addf %86, %91 : vector<8x1xf32>
    %93 = arith.mulf %92, %21 : vector<8x1xf32>
    %94 = vector.shape_cast %93 : vector<8x1xf32> to vector<1x8x1xf32>
    %cst_32 = arith.constant dense<0.000000e+00> : vector<1xf32>
    %95 = vector.multi_reduction <add>, %94, %cst_32 [1, 2] : vector<1x8x1xf32> to vector<1xf32>
    %96 = vector.shape_cast %95 : vector<1xf32> to vector<1x1x1xf32>
    %97 = vector.extract %96[0, 0, 0] : f32 from vector<1x1x1xf32>
    %98 = vector.broadcast %17 : vector<1x8xi1> to vector<8x8xi1>
    %99 = arith.andi %15, %98 : vector<8x8xi1>
    %cst_33 = arith.constant 1.000000e+00 : f32
    %cst_34 = arith.constant 0.000000e+00 : f32
    %100 = vector.broadcast %cst_33 : f32 to vector<8x8xf32>
    %101 = vector.broadcast %cst_34 : f32 to vector<8x8xf32>
    %102 = arith.select %99, %100, %101 : vector<8x8xi1>, vector<8x8xf32>
    %cst_35 = arith.constant dense<0.000000e+00> : vector<8xf32>
    %103 = vector.multi_reduction <add>, %102, %cst_35 [1] : vector<8x8xf32> to vector<8xf32>
    %104 = vector.shape_cast %103 : vector<8xf32> to vector<8x1xf32>
    %cst_36 = arith.constant 0.000000e+00 : f32
    %105 = vector.broadcast %cst_36 : f32 to vector<8x1xf32>
    %106 = arith.cmpf ogt, %104, %105 : vector<8x1xf32>
    %107 = arith.extui %106 : vector<8x1xi1> to vector<8x1xi32>
    %108 = arith.sitofp %107 : vector<8x1xi32> to vector<8x1xf32>
    %109 = arith.mulf %108, %21 : vector<8x1xf32>
    %110 = vector.shape_cast %109 : vector<8x1xf32> to vector<1x8x1xf32>
    %cst_37 = arith.constant dense<0.000000e+00> : vector<1xf32>
    %111 = vector.multi_reduction <add>, %110, %cst_37 [1, 2] : vector<1x8x1xf32> to vector<1xf32>
    %112 = vector.shape_cast %111 : vector<1xf32> to vector<1x1x1xf32>
    %113 = vector.extract %112[0, 0, 0] : f32 from vector<1x1x1xf32>
    %114 = tpu.iota {dimensions = array<i32: 2>} : vector<1x8x128xi32>
    %c0_i32_38 = arith.constant 0 : i32
    %115 = vector.broadcast %c0_i32_38 : i32 to vector<1x8x128xi32>
    %116 = arith.cmpi eq, %114, %115 : vector<1x8x128xi32>
    %c1_i32 = arith.constant 1 : i32
    %117 = vector.broadcast %c1_i32 : i32 to vector<1x8x128xi32>
    %118 = arith.cmpi eq, %114, %117 : vector<1x8x128xi32>
    %cst_39 = arith.constant 0.000000e+00 : f32
    %119 = vector.broadcast %113 : f32 to vector<1x8x128xf32>
    %120 = vector.broadcast %cst_39 : f32 to vector<1x8x128xf32>
    %121 = arith.select %118, %119, %120 : vector<1x8x128xi1>, vector<1x8x128xf32>
    %122 = vector.broadcast %97 : f32 to vector<1x8x128xf32>
    %123 = arith.select %116, %122, %121 : vector<1x8x128xi1>, vector<1x8x128xf32>
    %c0_40 = arith.constant 0 : index
    %c0_41 = arith.constant 0 : index
    %c0_42 = arith.constant 0 : index
    %124 = vector.load %arg5[%c0_40, %c0_41, %c0_42] : memref<1x8x128xf32, #tpu.memory_space<vmem>>, vector<1x8x128xf32>
    tpu.vector_store %arg5[%c0_40, %c0_41, %c0_42], %123 {strides = array<i32>} : memref<1x8x128xf32, #tpu.memory_space<vmem>>, vector<1x8x128xf32>,
    return
  }
  func.func @transform_0(%arg0: i32) -> (i32, i32) {
    %c0_i32 = arith.constant 0 : i32
    %c0_i32_0 = arith.constant 0 : i32
    return %arg0, %c0_i32 : i32, i32
  }
  func.func @transform_1(%arg0: i32) -> (i32, i32) {
    %c0_i32 = arith.constant 0 : i32
    %c0_i32_0 = arith.constant 0 : i32
    %c0_i32_1 = arith.constant 0 : i32
    return %c0_i32, %c0_i32_0 : i32, i32
  }
  func.func @transform_2(%arg0: i32) -> (i32, i32) {
    %c0_i32 = arith.constant 0 : i32
    %c0_i32_0 = arith.constant 0 : i32
    return %arg0, %c0_i32 : i32, i32
  }
  func.func @transform_3(%arg0: i32) -> (i32, i32) {
    %c0_i32 = arith.constant 0 : i32
    %c0_i32_0 = arith.constant 0 : i32
    %c0_i32_1 = arith.constant 0 : i32
    return %c0_i32, %c0_i32_0 : i32, i32
  }
  func.func @transform_4(%arg0: i32) -> (i32, i32, i32) {
    %c0_i32 = arith.constant 0 : i32
    %c0_i32_0 = arith.constant 0 : i32
    %c0_i32_1 = arith.constant 0 : i32
    return %arg0, %c0_i32, %c0_i32_0 : i32, i32, i32
  }
}

</mosaic_0001>

<llo_original>
// kernel: tpu_custom_call.1
$region0: #{tpu_custom_call.1}
  #allocation0 [shape = 'u32[]', space=smem, size = 0x4, offset = 0x4, fixed_abs, tag = 'smem constant byte address 0x4 - core index']
  #allocation1 [shape = 'u32[144,128]{1,0:T(1,128)}', space=vmem, size = 0x12000, scoped, tag = 'internal scratch']
  %s0 = inlined_call_operand.vmem [shape: f32[8,128], index: 0, kind: input, shape index: {}]
  %s1 = inlined_call_operand.vmem [shape: f32[128,8], index: 1, kind: input, shape index: {}]
  %s2 = inlined_call_operand.vmem [shape: s32[8,1], index: 2, kind: input, shape index: {}]
  %s3 = inlined_call_operand.vmem [shape: s32[1,8], index: 3, kind: input, shape index: {}]
  %s4 = inlined_call_operand.hbm [shape: f32[1,8,128], index: 4, kind: output, shape index: {}]
  %s5 = sld [smem:[#allocation0]]
  $region26: #{tpu_custom_call.1} parent=0
    _
  %s7 = ssub.s32 1, %s5
  %s8 = scalar_select 0, %s7, %s5
  $region1: #{tpu_custom_call.1} parent=0
    #allocation2 [shape = 'u8[4096]{0}', space=vmem, size = 0x1000, scoped, tag = 'output window, operand 0, single buffered']
    #allocation3 [shape = 's32[1]{0}', space=sflag, size = 0x4, scoped, tag = 'scoped memory for tpu_custom_call.1']
    %9 = vsyncpa [#allocation3], 0
    // Predicated region
    $region2: #{tpu_custom_call.1} parent=1 // pred_check
      _
    $region3: #{tpu_custom_call.1} parent=1 // pred_check_branch
      %11 = sbr.rel (0) target = $region5
    $region4: #{tpu_custom_call.1} parent=1 // pred_region
      _
    $region5: #{tpu_custom_call.1} parent=1 // pred_fallthru
      _
    // Predicated region
    $region6: #{tpu_custom_call.1} parent=1 // pred_check
      _
    $region7: #{tpu_custom_call.1} parent=1 // pred_check_branch
      %13 = sbr.rel (0) target = $region9
    $region8: #{tpu_custom_call.1} parent=1 // pred_region
      _
    $region9: #{tpu_custom_call.1} parent=1 // pred_fallthru
      _
    // Predicated region
    $region10: #{tpu_custom_call.1} parent=1 // pred_check
      _
    $region11: #{tpu_custom_call.1} parent=1 // pred_check_branch
      %15 = sbr.rel (0) target = $region13
    $region12: #{tpu_custom_call.1} parent=1 // pred_region
      _
    $region13: #{tpu_custom_call.1} parent=1 // pred_fallthru
      _
    // Predicated region
    $region14: #{tpu_custom_call.1} parent=1 // pred_check
      _
    $region15: #{tpu_custom_call.1} parent=1 // pred_check_branch
      %17 = sbr.rel (0) target = $region17
    $region16: #{tpu_custom_call.1} parent=1 // pred_region
      _
    $region17: #{tpu_custom_call.1} parent=1 // pred_fallthru
      _
    %v18 = vld [vmem:[%s0] sm:$0xff]
    %v19 = vmul.f32 %v18, %v18
    %20 = vadd.xlane.f32.xlu0 %v19
    %v21 = vpop.xlane.xlu0 %20
    %v22 = vmax.f32 %v21, 1e-24
    %v23 = vrsqrt.pop %v22
    %v24 = vmul.f32 %v18, %v23
    %v25 = vld [vmem:[%s1] sm:$0xff]
    %v26 = vld [vmem:[%s1 + $0x8] sm:$0xff]
    %v27 = vld [vmem:[%s1 + $0x10] sm:$0xff]
    %v28 = vld [vmem:[%s1 + $0x18] sm:$0xff]
    %v29 = vld [vmem:[%s1 + $0x20] sm:$0xff]
    %v30 = vld [vmem:[%s1 + $0x28] sm:$0xff]
    %v31 = vld [vmem:[%s1 + $0x30] sm:$0xff]
    %v32 = vld [vmem:[%s1 + $0x38] sm:$0xff]
    %v33 = vld [vmem:[%s1 + $0x40] sm:$0xff]
    %v34 = vld [vmem:[%s1 + $0x48] sm:$0xff]
    %v35 = vld [vmem:[%s1 + $0x50] sm:$0xff]
    %v36 = vld [vmem:[%s1 + $0x58] sm:$0xff]
    %v37 = vld [vmem:[%s1 + $0x60] sm:$0xff]
    %v38 = vld [vmem:[%s1 + $0x68] sm:$0xff]
    %v39 = vld [vmem:[%s1 + $0x70] sm:$0xff]
    %v40 = vld [vmem:[%s1 + $0x78] sm:$0xff]
    %41 = vmatprep.subr.mxu0 0.0
    %42 = vmatpush1.msra.mxu0 %v25
    %43 = vmatprep.subr.mxu0 0.0
    %44 = vmatpush1.msra.mxu0 %v26
    %45 = vmatprep.subr.mxu0 0.0
    %46 = vmatpush1.msra.mxu0 %v27
    %47 = vmatprep.subr.mxu0 0.0
    %48 = vmatpush1.msra.mxu0 %v28
    %49 = vmatprep.subr.mxu0 0.0
    %50 = vmatpush1.msra.mxu0 %v29
    %51 = vmatprep.subr.mxu0 0.0
    %52 = vmatpush1.msra.mxu0 %v30
    %53 = vmatprep.subr.mxu0 0.0
    %54 = vmatpush1.msra.mxu0 %v31
    %55 = vmatprep.subr.mxu0 0.0
    %56 = vmatpush1.msra.mxu0 %v32
    %57 = vmatprep.subr.mxu0 0.0
    %58 = vmatpush1.msra.mxu0 %v33
    %59 = vmatprep.subr.mxu0 0.0
    %60 = vmatpush1.msra.mxu0 %v34
    %61 = vmatprep.subr.mxu0 0.0
    %62 = vmatpush1.msra.mxu0 %v35
    %63 = vmatprep.subr.mxu0 0.0
    %64 = vmatpush1.msra.mxu0 %v36
    %65 = vmatprep.subr.mxu0 0.0
    %66 = vmatpush1.msra.mxu0 %v37
    %67 = vmatprep.subr.mxu0 0.0
    %68 = vmatpush1.msra.mxu0 %v38
    %69 = vmatprep.subr.mxu0 0.0
    %70 = vmatpush1.msra.mxu0 %v39
    %71 = vmatprep.subr.mxu0 0.0
    %72 = vmatpush1.msra.mxu0 %v40
    %73 = vmatprep.subr.mxu0 0.0
    %74 = vmatpush1.msra.mxu0 0.0
    %75 = vmatprep.subr.mxu0 0.0
    %76 = vmatpush1.msra.mxu0 0.0
    %77 = vmatprep.subr.mxu0 0.0
    %78 = vmatpush1.msra.mxu0 0.0
    %79 = vmatprep.subr.mxu0 0.0
    %80 = vmatpush1.msra.mxu0 0.0
    %81 = vmatprep.subr.mxu0 0.0
    %82 = vmatpush1.msra.mxu0 0.0
    %83 = vmatprep.subr.mxu0 0.0
    %84 = vmatpush1.msra.mxu0 0.0
    %85 = vmatprep.subr.mxu0 0.0
    %86 = vmatpush1.msra.mxu0 0.0
    %87 = vmatprep.subr.mxu0 0.0
    %88 = vmatpush1.msra.mxu0 0.0
    %89 = vmatprep.subr.mxu0 0.0
    %90 = vmatpush1.msra.mxu0 0.0
    %91 = vmatprep.subr.mxu0 0.0
    %92 = vmatpush1.msra.mxu0 0.0
    %93 = vmatprep.subr.mxu0 0.0
    %94 = vmatpush1.msra.mxu0 0.0
    %95 = vmatprep.subr.mxu0 0.0
    %96 = vmatpush1.msra.mxu0 0.0
    %97 = vmatprep.subr.mxu0 0.0
    %98 = vmatpush1.msra.mxu0 0.0
    %99 = vmatprep.subr.mxu0 0.0
    %100 = vmatpush1.msra.mxu0 0.0
    %101 = vmatprep.subr.mxu0 0.0
    %102 = vmatpush1.msra.mxu0 0.0
    %103 = vmatprep.subr.mxu0 0.0
    %104 = vmatpush1.msra.mxu0 0.0
    %105 = vmatprep.mubr.f32.mxu0 0.0
    %106 = vmatmul.mubr.f32.gmra.mrb[0].mxu0 %v24
    %v107 = vpop.f32.mrb[0].mxu0
    %v108 = vadd.f32 0.0, %v107
    %v109 = vpop.f32.mrb[0].mxu0
    %110 = vdwg.mxu0
    %v111 = vld [vmem:[%s2] sm:$0xff]
    %v112 = vld [vmem:[%s3] sm:$0x1]
    %113 = vset.pattern.permute.xlu0 0
    %114 = vperm.xlu0 %113, %v111
    %v115 = vpop.permute.xlu0 %114
    %v116 = vlaneseq
    %v117 = vshrl.u32 %v116, 7
    %v118 = vsub.s32 0, %v117
    %v119 = vrot.slane %v112, %v118
    %vm120 = vcmp.eq.s32.totalorder %v115, %v119
    %vm121 = vcmp.ge.s32.totalorder %v112, 0
    %vm122 = vcmp.ge.s32.totalorder %v111, 0
    %v123 = vsel %vm122, 1, 0
    %v124 = vcvt.s32.f32 %v123
    %s125 = smul.u32 0, 8
    %v126 = vlaneseq
    %v127 = vshrl.u32 %v126, 7
    %v128 = vstv %s125
    %v129 = vadd.s32 %v127, %v128
    %v130 = vlaneseq
    %v131 = vand.u32 %v130, 127
    %vm132 = vcmp.eq.s32.totalorder %v129, %v131
    %v133 = vsub.f32 %v108, 2.0
    %v134 = vsel %vm132, %v133, %v108
    %v135 = vsel %vm120, %v134, 0.0
    %vm136 = vmxor %vm120, 1
    %vm137 = vmxor %vm132, 1
    %vm138 = vmand %vm136, %vm137
    %v139 = vsel %vm138, %v134, 0.0
    %v140 = vsub.f32 0.0, %v135
    %v141 = vadd.f32 %v140, 1.25
    %v142 = vmax.f32 %v141, 0.0
    %v143 = vmul.f32 %v142, -256.0
    %v144 = vsub.f32 %v135, 0.75
    %v145 = vmul.f32 %v143, %v144
    %v146 = vadd.f32 %v139, 0.25
    %v147 = vmax.f32 %v146, 0.0
    %v148 = vmul.f32 %v147, 256.0
    %v149 = vsub.f32 %v139, 0.25
    %v150 = vmul.f32 %v148, %v149
    %v151 = vsel %vm121, 1, 0
    %v152 = vlaneseq
    %v153 = vshrl.u32 %v152, 7
    %v154 = vsub.s32 0, %v153
    %v155 = vrot.slane %v151, %v154
    %vm156 = vcmp.eq.s32.totalorder %v155, 1
    %v157 = vsel %vm156, %v145, -1e+30
    %v158 = vsel %vm156, %v150, -1e+30
    %vm159 = vcmask 64512
    %v160 = vsel %vm159, %v158, -inf
    %161 = vmax.xlane.f32.xlu0 %v160
    %v162 = vpop.xlane.xlu0 %161
    %v163 = vsub.f32 %v158, %v162
    %v164 = vmul.f32 %v163, 1.442695
    %v165 = vpow.pop %v164
    %v166 = vsel %vm159, %v165, 0.0
    %167 = vadd.xlane.f32.xlu0 %v166
    %v168 = vpop.xlane.xlu0 %167
    %v169 = vlog2.pop %v168
    %v170 = vmul.f32 %v169, 0.6931472
    %v171 = vadd.f32 %v162, %v170
    %v172 = vsel %vm159, %v157, -inf
    %173 = vmax.xlane.f32.xlu0 %v172
    %v174 = vpop.xlane.xlu0 %173
    %v175 = vsub.f32 %v157, %v174
    %v176 = vmul.f32 %v175, 1.442695
    %v177 = vpow.pop %v176
    %v178 = vsel %vm159, %v177, 0.0
    %179 = vadd.xlane.f32.xlu0 %v178
    %v180 = vpop.xlane.xlu0 %179
    %v181 = vlog2.pop %v180
    %v182 = vmul.f32 %v181, 0.6931472
    %v183 = vadd.f32 %v174, %v182
    %v184 = vadd.f32 %v171, %v183
    %v185 = vmax.f32 %v184, 0.0
    %v186 = vand.u32 2147483647, %v184
    %v187 = vsub.f32 0.0, %v186
    %v188 = vmul.f32 %v187, 1.442695
    %v189 = vpow.pop %v188
    %v190 = vadd.f32 %v189, 1.0
    %v191 = vlog2.pop %v190
    %v192 = vmul.f32 %v191, 0.6931472
    %v193 = vmul.f32 -0.5, %v189
    %v194 = vadd.f32 %v193, 1.0
    %v195 = vmul.f32 %v194, %v189
    %v196 = vand.u32 2147483647, %v189
    %vm197 = vcmp.lt.f32.partialorder %v196, 0.0004427343
    %v198 = vsel %vm197, %v195, %v192
    %v199 = vadd.f32 %v185, %v198
    %v200 = vmul.f32 %v199, %v124
    %vm201 = vcmask 7168
    %v202 = vsel %vm201, %v200, 0.0
    %203 = vadd.xlane.f32.xlu0 %v202
    %v204 = vpop.xlane.xlu0 %203
    %v205 = vrot.slane %v204, 4
    %v206 = vadd.f32 %v204, %v205
    %v207 = vrot.slane %v206, 2
    %v208 = vadd.f32 %v206, %v207
    %v209 = vrot.slane %v208, 1
    %v210 = vadd.f32 %v208, %v209
    %s211 = vtos %v210
    %vm212 = vmand %vm120, %vm156
    %v213 = vsel %vm212, 1.0, 0.0
    %v214 = vsel %vm159, %v213, 0.0
    %215 = vadd.xlane.f32.xlu0 %v214
    %v216 = vpop.xlane.xlu0 %215
    %vm217 = vcmp.gt.f32.partialorder %v216, 0.0
    %v218 = vsel %vm217, 1, 0
    %v219 = vcvt.s32.f32 %v218
    %v220 = vmul.f32 %v219, %v124
    %v221 = vsel %vm201, %v220, 0.0
    %222 = vadd.xlane.f32.xlu0 %v221
    %v223 = vpop.xlane.xlu0 %222
    %v224 = vrot.slane %v223, 4
    %v225 = vadd.f32 %v223, %v224
    %v226 = vrot.slane %v225, 2
    %v227 = vadd.f32 %v225, %v226
    %v228 = vrot.slane %v227, 1
    %v229 = vadd.f32 %v227, %v228
    %s230 = vtos %v229
    %vm231 = vcmp.eq.s32.totalorder %v131, 0
    %vm232 = vcmp.eq.s32.totalorder %v131, 1
    %v233 = vstv %s230
    %v234 = vsel %vm232, %v233, 0.0
    %v235 = vstv %s211
    %v236 = vsel %vm231, %v235, %v234
    %237 = vst [vmem:[#allocation2] sm:$0xff] %v236
    // Predicated region
    $region18: #{tpu_custom_call.1} parent=1 // pred_check
      _
    $region19: #{tpu_custom_call.1} parent=1 // pred_check_branch
      %239 = sbr.rel (0) target = $region21
    $region20: #{tpu_custom_call.1} parent=1 // pred_region
      %s241 = ssub.s32 128, 128
      %242 = vsyncadd [#allocation3], %s241
      %s244 = sshll.u32 [#allocation2], 4
      %s245 = int_to_ptr.vmem [resolvable:$true] %s244
      %247 = dma.vmem_to_hbm [thread:$0]  %s245, 128, %s4, [#allocation3]
    $region21: #{tpu_custom_call.1} parent=1 // pred_fallthru
      _
    // Predicated region
    $region22: #{tpu_custom_call.1} parent=1 // pred_check
      _
    $region23: #{tpu_custom_call.1} parent=1 // pred_check_branch
      %249 = sbr.rel (0) target = $region25
    $region24: #{tpu_custom_call.1} parent=1 // pred_region
      %250 = dma.done [#allocation3], 128
    $region25: #{tpu_custom_call.1} parent=1 // pred_fallthru
      _
    %251 = vsyncpa [#allocation3], 1

</llo_original>
